<compile_context>
chip_gen: v7x
topology: tpu7x:2x2x1
jax: 0.10.0
libtpu: 0.0.40
codegen_flags: <defaults>
</compile_context>

<pallas_src>
import numpy as np

import jax
import jax.numpy as jnp
from jax import lax
from jax.experimental import pallas as pl
from jax.experimental.pallas import tpu as pltpu

KH = KW = 3
D1, D2 = 2, 3          # dilations of conv1 / conv2
PAD = 1


# ----------------------------------------------------------------------------
# Weight packing (weights-only; hoist/cache this when params are static).
# ----------------------------------------------------------------------------
def _selection_tensors(H, W, Ho, Wo):
    """Static 0/1 tensors mapping conv taps to unpadded-input pixels.

    S1[kh, kw, ho, wo, h, w] = 1 iff conv1 (dilation D1, pad 1) tap (kh, kw) at
    output (ho, wo) reads input pixel (h, w); taps that fall in the zero-padding
    region are simply dropped.  S2 is the same for conv2's single (1x1) output.
    """
    S1 = np.zeros((KH, KW, Ho, Wo, H, W), np.float32)
    for kh in range(KH):
        for kw in range(KW):
            for ho in range(Ho):
                for wo in range(Wo):
                    h = ho + D1 * kh - PAD
                    w = wo + D1 * kw - PAD
                    if 0 <= h < H and 0 <= w < W:
                        S1[kh, kw, ho, wo, h, w] = 1.0
    S2 = np.zeros((KH, KW, H, W), np.float32)
    for kh in range(KH):
        for kw in range(KW):
            h = D2 * kh - PAD
            w = D2 * kw - PAD
            if 0 <= h < H and 0 <= w < W:
                S2[kh, kw, h, w] = 1.0
    return S1, S2


def pack_params(w1, b1, w2, b2, H, W):
    """Fold both dilated convs + broadcast-add into one GEMM weight matrix.

    Returns:
      k_packed: (Cin*H*W, Cout*Ho*Wo) f32, row index ci*H*W + h*W + w,
                col index co*Ho*Wo + ho*Wo + wo (i.e. NCHW output order).
      b_packed: (1, Cout*Ho*Wo) f32, combined bias b1 + b2.
    """
    Cout, Cin = w1.shape[0], w1.shape[1]
    Ho = H + 2 * PAD - D1 * (KH - 1)
    Wo = W + 2 * PAD - D1 * (KW - 1)
    S1, S2 = _selection_tensors(H, W, Ho, Wo)
    # conv1 lifted to (Cin, H, W, Cout, Ho, Wo); conv2 lifted to (Cin, H, W, Cout)
    # and broadcast over (Ho, Wo) -- this IS PyTorch's v1 + v2 broadcast.
    k1 = jnp.einsum("ocij,ijpqhw->chwopq", w1.astype(jnp.float32), jnp.asarray(S1))
    k2 = jnp.einsum("ocij,ijhw->chwo", w2.astype(jnp.float32), jnp.asarray(S2))
    k_packed = (k1 + k2[..., None, None]).reshape(Cin * H * W, Cout * Ho * Wo)
    b_packed = jnp.repeat((b1 + b2).astype(jnp.float32), Ho * Wo).reshape(1, Cout * Ho * Wo)
    return k_packed, b_packed


# ----------------------------------------------------------------------------
# Kernel: one GEMM + bias + ReLU, whole batch at once.
# ----------------------------------------------------------------------------
def fused_conv_add_relu_kernel(x_ref, k_ref, b_ref, o_ref):
    """x_ref: (N, Cin*H*W)  raw NCHW image, flattened (free reshape).
       k_ref: (Cin*H*W, Cout*Ho*Wo) packed conv1+conv2 weights.
       b_ref: (1, Cout*Ho*Wo)      combined bias b1+b2 (pre-broadcast over s).
       o_ref: (N, Cout*Ho*Wo)      output, already NCHW-ordered.
    """
    acc = jnp.dot(x_ref[...], k_ref[...],
                  preferred_element_type=jnp.float32,
                  precision=lax.Precision.HIGHEST)
    o_ref[...] = jnp.maximum(acc + b_ref[...], 0.0).astype(o_ref.dtype)


def fused_forward(x_nchw, k_packed, b_packed):
    """Forward pass given pre-packed weights (packing amortizable across calls)."""
    N, Cin, H, W = x_nchw.shape
    Ho = H + 2 * PAD - D1 * (KH - 1)
    Wo = W + 2 * PAD - D1 * (KW - 1)
    S = Ho * Wo
    Cout = k_packed.shape[1] // S

    # Free reshape: NCHW is already contiguous in (ci, h, w) order.
    x_flat = x_nchw.reshape(N, Cin * H * W).astype(jnp.float32)

    flops = 2 * N * (Cin * H * W) * (Cout * S) + 2 * N * Cout * S
    bytes_accessed = 4 * (x_flat.size + k_packed.size + b_packed.size + N * Cout * S)

    out = pl.pallas_call(
        fused_conv_add_relu_kernel,
        out_shape=jax.ShapeDtypeStruct((N, Cout * S), x_nchw.dtype),
        in_specs=[pl.BlockSpec(memory_space=pltpu.MemorySpace.VMEM)] * 3,
        out_specs=pl.BlockSpec(memory_space=pltpu.MemorySpace.VMEM),
        cost_estimate=pl.CostEstimate(flops=int(flops), transcendentals=0,
                                      bytes_accessed=int(bytes_accessed)),
    )(x_flat, k_packed, b_packed)

    # Column order is co*S + ho*Wo + wo, so this reshape is free (NCHW).
    return out.reshape(N, Cout, Ho, Wo)


def model_forward(x_nchw, w1, b1, w2, b2):
    """x_nchw: (N, 3, H, W); w*: (Cout, Cin, 3, 3); b*: (Cout,)."""
    N, Cin, H, W = x_nchw.shape
    # Fail loudly (like PyTorch) unless the v1 + v2 broadcast is actually valid.
    if not (H == 5 and W == 5):
        raise ValueError(
            "v1 + v2 only broadcasts when conv1/conv2 outputs are (H-2,W-2) and "
            f"(1,1), i.e. H=W=5; got H={H}, W={W} (PyTorch would raise too).")
    k_packed, b_packed = pack_params(w1, b1, w2, b2, H, W)
    return fused_forward(x_nchw, k_packed, b_packed)


# ----------------------------------------------------------------------------
# Pure-JAX reference (same math as torch.nn.Conv2d) and test driver.
# ----------------------------------------------------------------------------
def _reference(x_nchw, w1, b1, w2, b2):
    def conv(x, w, b, d):
        y = lax.conv_general_dilated(
            x, w, window_strides=(1, 1), padding=((PAD, PAD), (PAD, PAD)),
            rhs_dilation=(d, d),
            dimension_numbers=("NCHW", "OIHW", "NCHW"))
        return y + b[None, :, None, None]
    v1 = conv(x_nchw, w1, b1, D1)
    v2 = conv(x_nchw, w2, b2, D2)
    return jnp.maximum(v1 + v2, 0.0)


if __name__ == "__main__":
    key = jax.random.PRNGKey(0)
    kx, k1, k2, k3, k4 = jax.random.split(key, 5)

    N, Cin, Cout, H, W = 2, 3, 8, 5, 5   # H=W=5 => conv2 output is 1x1 (broadcastable)
    x = jax.random.normal(kx, (N, Cin, H, W), dtype=jnp.float32)

    # PyTorch-style init: U(-bound, bound), bound = 1/sqrt(fan_in)
    bound = 1.0 / (Cin * KH * KW) ** 0.5
    w1 = jax.random.uniform(k1, (Cout, Cin, KH, KW), jnp.float32, -bound, bound)
    b1 = jax.random.uniform(k2, (Cout,), jnp.float32, -bound, bound)
    w2 = jax.random.uniform(k3, (Cout, Cin, KH, KW), jnp.float32, -bound, bound)
    b2 = jax.random.uniform(k4, (Cout,), jnp.float32, -bound, bound)

    out = jax.jit(model_forward)(x, w1, b1, w2, b2)
    out = jax.block_until_ready(out)

    ref = _reference(x, w1, b1, w2, b2)
    assert out.shape == (N, Cout, H - 2, W - 2), out.shape
    assert jnp.allclose(out, ref, atol=1e-4, rtol=1e-4), "mismatch vs reference"

    print("KERNEL_OK")
</pallas_src>

<mosaic_0001>
module attributes {stable_mosaic.version = 11 : i64} {
  func.func @fused_conv_add_relu_kernel(%arg0: memref<2x75xf32, #tpu.memory_space<vmem>>, %arg1: memref<75x72xf32, #tpu.memory_space<vmem>>, %arg2: memref<1x72xf32, #tpu.memory_space<vmem>>, %arg3: memref<2x72xf32, #tpu.memory_space<vmem>>) attributes {dimension_semantics = [], scalar_prefetch = 0 : i64, scratch_operands = 0 : i64, tpu.core_type = #tpu.core_type<tc>} {
    %c0 = arith.constant 0 : index
    %c0_0 = arith.constant 0 : index
    %0 = vector.load %arg0[%c0, %c0_0] : memref<2x75xf32, #tpu.memory_space<vmem>>, vector<2x75xf32>
    %c0_1 = arith.constant 0 : index
    %c0_2 = arith.constant 0 : index
    %1 = vector.load %arg1[%c0_1, %c0_2] : memref<75x72xf32, #tpu.memory_space<vmem>>, vector<75x72xf32>
    %cst = arith.constant dense<0.000000e+00> : vector<2x72xf32>
    %2 = tpu.matmul %0, %1, %cst {dimension_numbers = #tpu.dot_dimension_numbers<[1], [0], [0], [1], [0, 0, 1, 1], [], []>, precision = #tpu.contract_precision<fp32>} : vector<2x75xf32>, vector<75x72xf32>, vector<2x72xf32> -> vector<2x72xf32>
    %c0_3 = arith.constant 0 : index
    %c0_4 = arith.constant 0 : index
    %3 = vector.load %arg2[%c0_3, %c0_4] : memref<1x72xf32, #tpu.memory_space<vmem>>, vector<1x72xf32>
    %4 = vector.broadcast %3 : vector<1x72xf32> to vector<2x72xf32>
    %5 = arith.addf %2, %4 : vector<2x72xf32>
    %cst_5 = arith.constant 0.000000e+00 : f32
    %6 = vector.broadcast %cst_5 : f32 to vector<2x72xf32>
    %7 = arith.maximumf %5, %6 : vector<2x72xf32>
    %c0_6 = arith.constant 0 : index
    %c0_7 = arith.constant 0 : index
    %8 = vector.load %arg3[%c0_6, %c0_7] : memref<2x72xf32, #tpu.memory_space<vmem>>, vector<2x72xf32>
    tpu.vector_store %arg3[%c0_6, %c0_7], %7 {strides = array<i32>} : memref<2x72xf32, #tpu.memory_space<vmem>>, vector<2x72xf32>,
    return
  }
}

</mosaic_0001>

<llo_original>
// kernel: model_forward.1
$region0: #{model_forward.1}
  #allocation0 [shape = 'u32[]', space=smem, size = 0x4, offset = 0x4, fixed_abs, tag = 'smem constant byte address 0x4 - core index']
  #allocation1 [shape = 'u32[144,128]{1,0:T(1,128)}', space=vmem, size = 0x12000, scoped, tag = 'internal scratch']
  %s0 = inlined_call_operand.vmem [shape: f32[2,75], index: 0, kind: input, shape index: {}]
  %s1 = inlined_call_operand.vmem [shape: f32[75,72], index: 1, kind: input, shape index: {}]
  %s2 = inlined_call_operand.vmem [shape: f32[1,72], index: 2, kind: input, shape index: {}]
  %s3 = inlined_call_operand.vmem [shape: f32[2,72], index: 3, kind: output, shape index: {}]
  %s4 = sld [smem:[#allocation0]]
  $region22: #{model_forward.1} parent=0
    _
  %s6 = ssub.s32 1, %s4
  %s7 = scalar_select 0, %s6, %s4
  // Predicated region
  $region2: #{model_forward.1} parent=0 // pred_check
    _
  $region3: #{model_forward.1} parent=0 // pred_check_branch
    %9 = sbr.rel (0) target = $region5
  $region4: #{model_forward.1} parent=0 // pred_region
    _
  $region5: #{model_forward.1} parent=0 // pred_fallthru
    _
  // Predicated region
  $region6: #{model_forward.1} parent=0 // pred_check
    _
  $region7: #{model_forward.1} parent=0 // pred_check_branch
    %11 = sbr.rel (0) target = $region9
  $region8: #{model_forward.1} parent=0 // pred_region
    _
  $region9: #{model_forward.1} parent=0 // pred_fallthru
    _
  // Predicated region
  $region10: #{model_forward.1} parent=0 // pred_check
    _
  $region11: #{model_forward.1} parent=0 // pred_check_branch
    %13 = sbr.rel (0) target = $region13
  $region12: #{model_forward.1} parent=0 // pred_region
    _
  $region13: #{model_forward.1} parent=0 // pred_fallthru
    _
  %v14 = vld [vmem:[%s0] sm:$0x3]
  %v15 = vld [vmem:[%s1] sm:$0xff]
  %v16 = vld [vmem:[%s1 + $0x8] sm:$0xff]
  %v17 = vld [vmem:[%s1 + $0x10] sm:$0xff]
  %v18 = vld [vmem:[%s1 + $0x18] sm:$0xff]
  %v19 = vld [vmem:[%s1 + $0x20] sm:$0xff]
  %v20 = vld [vmem:[%s1 + $0x28] sm:$0xff]
  %v21 = vld [vmem:[%s1 + $0x30] sm:$0xff]
  %v22 = vld [vmem:[%s1 + $0x38] sm:$0xff]
  %v23 = vld [vmem:[%s1 + $0x40] sm:$0xff]
  %v24 = vld [vmem:[%s1 + $0x48] sm:$0x7]
  %v25 = vld [vmem:[%s2] sm:$0x1]
  %v27 = vlaneseq
  %v28 = vshrl.u32 %v27, 7
  %v29 = vsub.s32 0, %v28
  %v30 = vrot.slane %v25, %v29
  %vm32 = vcmask 613376
  %v34 = vsel %vm32, %v14, 0
  %vm36 = vcmask 1042432
  %v38 = vsel %vm36, %v24, 0
  %40 = vmatprep.subr.mxu0 0.0
  %v41 = vand.u32 %v15, 4294901760
  %42 = vmatpush1.msra.mxu0 %v41
  %43 = vmatprep.subr.mxu0 0.0
  %v44 = vand.u32 %v16, 4294901760
  %45 = vmatpush1.msra.mxu0 %v44
  %46 = vmatprep.subr.mxu0 0.0
  %v47 = vand.u32 %v17, 4294901760
  %48 = vmatpush1.msra.mxu0 %v47
  %49 = vmatprep.subr.mxu0 0.0
  %v50 = vand.u32 %v18, 4294901760
  %51 = vmatpush1.msra.mxu0 %v50
  %52 = vmatprep.subr.mxu0 0.0
  %v53 = vand.u32 %v19, 4294901760
  %54 = vmatpush1.msra.mxu0 %v53
  %55 = vmatprep.subr.mxu0 0.0
  %v56 = vand.u32 %v20, 4294901760
  %57 = vmatpush1.msra.mxu0 %v56
  %58 = vmatprep.subr.mxu0 0.0
  %v59 = vand.u32 %v21, 4294901760
  %60 = vmatpush1.msra.mxu0 %v59
  %61 = vmatprep.subr.mxu0 0.0
  %v62 = vand.u32 %v22, 4294901760
  %63 = vmatpush1.msra.mxu0 %v62
  %64 = vmatprep.subr.mxu0 0.0
  %v65 = vand.u32 %v23, 4294901760
  %66 = vmatpush1.msra.mxu0 %v65
  %67 = vmatprep.subr.mxu0 0.0
  %v68 = vand.u32 %v38, 4294901760
  %69 = vmatpush1.msra.mxu0 %v68
  %70 = vmatprep.subr.mxu0 0.0
  %71 = vmatpush1.msra.mxu0 0.0
  %72 = vmatprep.subr.mxu0 0.0
  %73 = vmatpush1.msra.mxu0 0.0
  %74 = vmatprep.subr.mxu0 0.0
  %75 = vmatpush1.msra.mxu0 0.0
  %76 = vmatprep.subr.mxu0 0.0
  %77 = vmatpush1.msra.mxu0 0.0
  %78 = vmatprep.subr.mxu0 0.0
  %79 = vmatpush1.msra.mxu0 0.0
  %80 = vmatprep.subr.mxu0 0.0
  %81 = vmatpush1.msra.mxu0 0.0
  %82 = vmatprep.subr.mxu0 0.0
  %83 = vmatpush1.msra.mxu0 0.0
  %84 = vmatprep.subr.mxu0 0.0
  %85 = vmatpush1.msra.mxu0 0.0
  %86 = vmatprep.subr.mxu0 0.0
  %87 = vmatpush1.msra.mxu0 0.0
  %88 = vmatprep.subr.mxu0 0.0
  %89 = vmatpush1.msra.mxu0 0.0
  %90 = vmatprep.subr.mxu0 0.0
  %91 = vmatpush1.msra.mxu0 0.0
  %92 = vmatprep.subr.mxu0 0.0
  %93 = vmatpush1.msra.mxu0 0.0
  %94 = vmatprep.subr.mxu0 0.0
  %95 = vmatpush1.msra.mxu0 0.0
  %96 = vmatprep.subr.mxu0 0.0
  %97 = vmatpush1.msra.mxu0 0.0
  %98 = vmatprep.subr.mxu0 0.0
  %99 = vmatpush1.msra.mxu0 0.0
  %100 = vmatprep.subr.mxu0 0.0
  %101 = vmatpush1.msra.mxu0 0.0
  %102 = vmatprep.subr.mxu0 0.0
  %103 = vmatpush1.msra.mxu0 0.0
  %104 = vmatprep.subr.mxu0 0.0
  %105 = vmatpush1.msra.mxu0 0.0
  %106 = vmatprep.subr.mxu0 0.0
  %107 = vmatpush1.msra.mxu0 0.0
  %108 = vmatprep.subr.mxu0 0.0
  %109 = vmatpush1.msra.mxu0 0.0
  %110 = vmatprep.subr.mxu0 0.0
  %111 = vmatpush1.msra.mxu0 0.0
  %112 = vmatprep.subr.mxu0 0.0
  %113 = vmatpush1.msra.mxu0 0.0
  %114 = vmatprep.mubr.f32.mxu0 0.0
  %v115 = vand.u32 %v34, 4294901760
  %v116 = vsub.f32 %v34, %v115
  %v117 = vand.u32 %v116, 4294901760
  %v118 = vsub.f32 %v116, %v117
  %v119 = vand.u32 %v118, 4294901760
  %120 = vmatmul.mubr.f32.gmra.mrb[0].mxu0 %v119
  %v121 = vpop.f32.mrb[0].mxu0
  %v122 = vadd.f32 %v30, %v121
  %v123 = vpop.f32.mrb[0].mxu0
  %124 = vdwg.mxu0
  %125 = vmatprep.subr.mxu0 0.0
  %v126 = vand.u32 %v15, 4294901760
  %v127 = vsub.f32 %v15, %v126
  %v128 = vand.u32 %v127, 4294901760
  %v129 = vsub.f32 %v127, %v128
  %v130 = vand.u32 %v129, 4294901760
  %131 = vmatpush1.msra.mxu0 %v130
  %132 = vmatprep.subr.mxu0 0.0
  %v133 = vand.u32 %v16, 4294901760
  %v134 = vsub.f32 %v16, %v133
  %v135 = vand.u32 %v134, 4294901760
  %v136 = vsub.f32 %v134, %v135
  %v137 = vand.u32 %v136, 4294901760
  %138 = vmatpush1.msra.mxu0 %v137
  %139 = vmatprep.subr.mxu0 0.0
  %v140 = vand.u32 %v17, 4294901760
  %v141 = vsub.f32 %v17, %v140
  %v142 = vand.u32 %v141, 4294901760
  %v143 = vsub.f32 %v141, %v142
  %v144 = vand.u32 %v143, 4294901760
  %145 = vmatpush1.msra.mxu0 %v144
  %146 = vmatprep.subr.mxu0 0.0
  %v147 = vand.u32 %v18, 4294901760
  %v148 = vsub.f32 %v18, %v147
  %v149 = vand.u32 %v148, 4294901760
  %v150 = vsub.f32 %v148, %v149
  %v151 = vand.u32 %v150, 4294901760
  %152 = vmatpush1.msra.mxu0 %v151
  %153 = vmatprep.subr.mxu0 0.0
  %v154 = vand.u32 %v19, 4294901760
  %v155 = vsub.f32 %v19, %v154
  %v156 = vand.u32 %v155, 4294901760
  %v157 = vsub.f32 %v155, %v156
  %v158 = vand.u32 %v157, 4294901760
  %159 = vmatpush1.msra.mxu0 %v158
  %160 = vmatprep.subr.mxu0 0.0
  %v161 = vand.u32 %v20, 4294901760
  %v162 = vsub.f32 %v20, %v161
  %v163 = vand.u32 %v162, 4294901760
  %v164 = vsub.f32 %v162, %v163
  %v165 = vand.u32 %v164, 4294901760
  %166 = vmatpush1.msra.mxu0 %v165
  %167 = vmatprep.subr.mxu0 0.0
  %v168 = vand.u32 %v21, 4294901760
  %v169 = vsub.f32 %v21, %v168
  %v170 = vand.u32 %v169, 4294901760
  %v171 = vsub.f32 %v169, %v170
  %v172 = vand.u32 %v171, 4294901760
  %173 = vmatpush1.msra.mxu0 %v172
  %174 = vmatprep.subr.mxu0 0.0
  %v175 = vand.u32 %v22, 4294901760
  %v176 = vsub.f32 %v22, %v175
  %v177 = vand.u32 %v176, 4294901760
  %v178 = vsub.f32 %v176, %v177
  %v179 = vand.u32 %v178, 4294901760
  %180 = vmatpush1.msra.mxu0 %v179
  %181 = vmatprep.subr.mxu0 0.0
  %v182 = vand.u32 %v23, 4294901760
  %v183 = vsub.f32 %v23, %v182
  %v184 = vand.u32 %v183, 4294901760
  %v185 = vsub.f32 %v183, %v184
  %v186 = vand.u32 %v185, 4294901760
  %187 = vmatpush1.msra.mxu0 %v186
  %188 = vmatprep.subr.mxu0 0.0
  %v189 = vand.u32 %v38, 4294901760
  %v190 = vsub.f32 %v38, %v189
  %v191 = vand.u32 %v190, 4294901760
  %v192 = vsub.f32 %v190, %v191
  %v193 = vand.u32 %v192, 4294901760
  %194 = vmatpush1.msra.mxu0 %v193
  %195 = vmatprep.subr.mxu0 0.0
  %196 = vmatpush1.msra.mxu0 0.0
  %197 = vmatprep.subr.mxu0 0.0
  %198 = vmatpush1.msra.mxu0 0.0
  %199 = vmatprep.subr.mxu0 0.0
  %200 = vmatpush1.msra.mxu0 0.0
  %201 = vmatprep.subr.mxu0 0.0
  %202 = vmatpush1.msra.mxu0 0.0
  %203 = vmatprep.subr.mxu0 0.0
  %204 = vmatpush1.msra.mxu0 0.0
  %205 = vmatprep.subr.mxu0 0.0
  %206 = vmatpush1.msra.mxu0 0.0
  %207 = vmatprep.subr.mxu0 0.0
  %208 = vmatpush1.msra.mxu0 0.0
  %209 = vmatprep.subr.mxu0 0.0
  %210 = vmatpush1.msra.mxu0 0.0
  %211 = vmatprep.subr.mxu0 0.0
  %212 = vmatpush1.msra.mxu0 0.0
  %213 = vmatprep.subr.mxu0 0.0
  %214 = vmatpush1.msra.mxu0 0.0
  %215 = vmatprep.subr.mxu0 0.0
  %216 = vmatpush1.msra.mxu0 0.0
  %217 = vmatprep.subr.mxu0 0.0
  %218 = vmatpush1.msra.mxu0 0.0
  %219 = vmatprep.subr.mxu0 0.0
  %220 = vmatpush1.msra.mxu0 0.0
  %221 = vmatprep.subr.mxu0 0.0
  %222 = vmatpush1.msra.mxu0 0.0
  %223 = vmatprep.subr.mxu0 0.0
  %224 = vmatpush1.msra.mxu0 0.0
  %225 = vmatprep.subr.mxu0 0.0
  %226 = vmatpush1.msra.mxu0 0.0
  %227 = vmatprep.subr.mxu0 0.0
  %228 = vmatpush1.msra.mxu0 0.0
  %229 = vmatprep.subr.mxu0 0.0
  %230 = vmatpush1.msra.mxu0 0.0
  %231 = vmatprep.subr.mxu0 0.0
  %232 = vmatpush1.msra.mxu0 0.0
  %233 = vmatprep.subr.mxu0 0.0
  %234 = vmatpush1.msra.mxu0 0.0
  %235 = vmatprep.subr.mxu0 0.0
  %236 = vmatpush1.msra.mxu0 0.0
  %237 = vmatprep.subr.mxu0 0.0
  %238 = vmatpush1.msra.mxu0 0.0
  %239 = vmatprep.mubr.f32.mxu0 0.0
  %v240 = vand.u32 %v34, 4294901760
  %241 = vmatmul.mubr.f32.gmra.mrb[0].mxu0 %v240
  %v242 = vpop.f32.mrb[0].mxu0
  %v243 = vadd.f32 %v122, %v242
  %v244 = vpop.f32.mrb[0].mxu0
  %245 = vdwg.mxu0
  %246 = vmatprep.subr.mxu0 0.0
  %v247 = vand.u32 %v15, 4294901760
  %v248 = vsub.f32 %v15, %v247
  %249 = vmatpush1.msra.mxu0 %v248
  %250 = vmatprep.subr.mxu0 0.0
  %v251 = vand.u32 %v16, 4294901760
  %v252 = vsub.f32 %v16, %v251
  %253 = vmatpush1.msra.mxu0 %v252
  %254 = vmatprep.subr.mxu0 0.0
  %v255 = vand.u32 %v17, 4294901760
  %v256 = vsub.f32 %v17, %v255
  %257 = vmatpush1.msra.mxu0 %v256
  %258 = vmatprep.subr.mxu0 0.0
  %v259 = vand.u32 %v18, 4294901760
  %v260 = vsub.f32 %v18, %v259
  %261 = vmatpush1.msra.mxu0 %v260
  %262 = vmatprep.subr.mxu0 0.0
  %v263 = vand.u32 %v19, 4294901760
  %v264 = vsub.f32 %v19, %v263
  %265 = vmatpush1.msra.mxu0 %v264
  %266 = vmatprep.subr.mxu0 0.0
  %v267 = vand.u32 %v20, 4294901760
  %v268 = vsub.f32 %v20, %v267
  %269 = vmatpush1.msra.mxu0 %v268
  %270 = vmatprep.subr.mxu0 0.0
  %v271 = vand.u32 %v21, 4294901760
  %v272 = vsub.f32 %v21, %v271
  %273 = vmatpush1.msra.mxu0 %v272
  %274 = vmatprep.subr.mxu0 0.0
  %v275 = vand.u32 %v22, 4294901760
  %v276 = vsub.f32 %v22, %v275
  %277 = vmatpush1.msra.mxu0 %v276
  %278 = vmatprep.subr.mxu0 0.0
  %v279 = vand.u32 %v23, 4294901760
  %v280 = vsub.f32 %v23, %v279
  %281 = vmatpush1.msra.mxu0 %v280
  %282 = vmatprep.subr.mxu0 0.0
  %v283 = vand.u32 %v38, 4294901760
  %v284 = vsub.f32 %v38, %v283
  %285 = vmatpush1.msra.mxu0 %v284
  %286 = vmatprep.subr.mxu0 0.0
  %287 = vmatpush1.msra.mxu0 0.0
  %288 = vmatprep.subr.mxu0 0.0
  %289 = vmatpush1.msra.mxu0 0.0
  %290 = vmatprep.subr.mxu0 0.0
  %291 = vmatpush1.msra.mxu0 0.0
  %292 = vmatprep.subr.mxu0 0.0
  %293 = vmatpush1.msra.mxu0 0.0
  %294 = vmatprep.subr.mxu0 0.0
  %295 = vmatpush1.msra.mxu0 0.0
  %296 = vmatprep.subr.mxu0 0.0
  %297 = vmatpush1.msra.mxu0 0.0
  %298 = vmatprep.subr.mxu0 0.0
  %299 = vmatpush1.msra.mxu0 0.0
  %300 = vmatprep.subr.mxu0 0.0
  %301 = vmatpush1.msra.mxu0 0.0
  %302 = vmatprep.subr.mxu0 0.0
  %303 = vmatpush1.msra.mxu0 0.0
  %304 = vmatprep.subr.mxu0 0.0
  %305 = vmatpush1.msra.mxu0 0.0
  %306 = vmatprep.subr.mxu0 0.0
  %307 = vmatpush1.msra.mxu0 0.0
  %308 = vmatprep.subr.mxu0 0.0
  %309 = vmatpush1.msra.mxu0 0.0
  %310 = vmatprep.subr.mxu0 0.0
  %311 = vmatpush1.msra.mxu0 0.0
  %312 = vmatprep.subr.mxu0 0.0
  %313 = vmatpush1.msra.mxu0 0.0
  %314 = vmatprep.subr.mxu0 0.0
  %315 = vmatpush1.msra.mxu0 0.0
  %316 = vmatprep.subr.mxu0 0.0
  %317 = vmatpush1.msra.mxu0 0.0
  %318 = vmatprep.subr.mxu0 0.0
  %319 = vmatpush1.msra.mxu0 0.0
  %320 = vmatprep.subr.mxu0 0.0
  %321 = vmatpush1.msra.mxu0 0.0
  %322 = vmatprep.subr.mxu0 0.0
  %323 = vmatpush1.msra.mxu0 0.0
  %324 = vmatprep.subr.mxu0 0.0
  %325 = vmatpush1.msra.mxu0 0.0
  %326 = vmatprep.subr.mxu0 0.0
  %327 = vmatpush1.msra.mxu0 0.0
  %328 = vmatprep.subr.mxu0 0.0
  %329 = vmatpush1.msra.mxu0 0.0
  %330 = vmatprep.mubr.f32.mxu0 0.0
  %v331 = vand.u32 %v34, 4294901760
  %v332 = vsub.f32 %v34, %v331
  %333 = vmatmul.mubr.f32.gmra.mrb[0].mxu0 %v332
  %v334 = vpop.f32.mrb[0].mxu0
  %v335 = vadd.f32 %v243, %v334
  %v336 = vpop.f32.mrb[0].mxu0
  %337 = vdwg.mxu0
  %338 = vmatprep.subr.mxu0 0.0
  %v339 = vand.u32 %v15, 4294901760
  %340 = vmatpush1.msra.mxu0 %v339
  %341 = vmatprep.subr.mxu0 0.0
  %v342 = vand.u32 %v16, 4294901760
  %343 = vmatpush1.msra.mxu0 %v342
  %344 = vmatprep.subr.mxu0 0.0
  %v345 = vand.u32 %v17, 4294901760
  %346 = vmatpush1.msra.mxu0 %v345
  %347 = vmatprep.subr.mxu0 0.0
  %v348 = vand.u32 %v18, 4294901760
  %349 = vmatpush1.msra.mxu0 %v348
  %350 = vmatprep.subr.mxu0 0.0
  %v351 = vand.u32 %v19, 4294901760
  %352 = vmatpush1.msra.mxu0 %v351
  %353 = vmatprep.subr.mxu0 0.0
  %v354 = vand.u32 %v20, 4294901760
  %355 = vmatpush1.msra.mxu0 %v354
  %356 = vmatprep.subr.mxu0 0.0
  %v357 = vand.u32 %v21, 4294901760
  %358 = vmatpush1.msra.mxu0 %v357
  %359 = vmatprep.subr.mxu0 0.0
  %v360 = vand.u32 %v22, 4294901760
  %361 = vmatpush1.msra.mxu0 %v360
  %362 = vmatprep.subr.mxu0 0.0
  %v363 = vand.u32 %v23, 4294901760
  %364 = vmatpush1.msra.mxu0 %v363
  %365 = vmatprep.subr.mxu0 0.0
  %v366 = vand.u32 %v38, 4294901760
  %367 = vmatpush1.msra.mxu0 %v366
  %368 = vmatprep.subr.mxu0 0.0
  %369 = vmatpush1.msra.mxu0 0.0
  %370 = vmatprep.subr.mxu0 0.0
  %371 = vmatpush1.msra.mxu0 0.0
  %372 = vmatprep.subr.mxu0 0.0
  %373 = vmatpush1.msra.mxu0 0.0
  %374 = vmatprep.subr.mxu0 0.0
  %375 = vmatpush1.msra.mxu0 0.0
  %376 = vmatprep.subr.mxu0 0.0
  %377 = vmatpush1.msra.mxu0 0.0
  %378 = vmatprep.subr.mxu0 0.0
  %379 = vmatpush1.msra.mxu0 0.0
  %380 = vmatprep.subr.mxu0 0.0
  %381 = vmatpush1.msra.mxu0 0.0
  %382 = vmatprep.subr.mxu0 0.0
  %383 = vmatpush1.msra.mxu0 0.0
  %384 = vmatprep.subr.mxu0 0.0
  %385 = vmatpush1.msra.mxu0 0.0
  %386 = vmatprep.subr.mxu0 0.0
  %387 = vmatpush1.msra.mxu0 0.0
  %388 = vmatprep.subr.mxu0 0.0
  %389 = vmatpush1.msra.mxu0 0.0
  %390 = vmatprep.subr.mxu0 0.0
  %391 = vmatpush1.msra.mxu0 0.0
  %392 = vmatprep.subr.mxu0 0.0
  %393 = vmatpush1.msra.mxu0 0.0
  %394 = vmatprep.subr.mxu0 0.0
  %395 = vmatpush1.msra.mxu0 0.0
  %396 = vmatprep.subr.mxu0 0.0
  %397 = vmatpush1.msra.mxu0 0.0
  %398 = vmatprep.subr.mxu0 0.0
  %399 = vmatpush1.msra.mxu0 0.0
  %400 = vmatprep.subr.mxu0 0.0
  %401 = vmatpush1.msra.mxu0 0.0
  %402 = vmatprep.subr.mxu0 0.0
  %403 = vmatpush1.msra.mxu0 0.0
  %404 = vmatprep.subr.mxu0 0.0
  %405 = vmatpush1.msra.mxu0 0.0
  %406 = vmatprep.subr.mxu0 0.0
  %407 = vmatpush1.msra.mxu0 0.0
  %408 = vmatprep.subr.mxu0 0.0
  %409 = vmatpush1.msra.mxu0 0.0
  %410 = vmatprep.subr.mxu0 0.0
  %411 = vmatpush1.msra.mxu0 0.0
  %412 = vmatprep.mubr.f32.mxu0 0.0
  %v413 = vand.u32 %v34, 4294901760
  %v414 = vsub.f32 %v34, %v413
  %v415 = vand.u32 %v414, 4294901760
  %416 = vmatmul.mubr.f32.gmra.mrb[0].mxu0 %v415
  %v417 = vpop.f32.mrb[0].mxu0
  %v418 = vadd.f32 %v335, %v417
  %v419 = vpop.f32.mrb[0].mxu0
  %420 = vdwg.mxu0
  %421 = vmatprep.subr.mxu0 0.0
  %v422 = vand.u32 %v15, 4294901760
  %v423 = vsub.f32 %v15, %v422
  %v424 = vand.u32 %v423, 4294901760
  %425 = vmatpush1.msra.mxu0 %v424
  %426 = vmatprep.subr.mxu0 0.0
  %v427 = vand.u32 %v16, 4294901760
  %v428 = vsub.f32 %v16, %v427
  %v429 = vand.u32 %v428, 4294901760
  %430 = vmatpush1.msra.mxu0 %v429
  %431 = vmatprep.subr.mxu0 0.0
  %v432 = vand.u32 %v17, 4294901760
  %v433 = vsub.f32 %v17, %v432
  %v434 = vand.u32 %v433, 4294901760
  %435 = vmatpush1.msra.mxu0 %v434
  %436 = vmatprep.subr.mxu0 0.0
  %v437 = vand.u32 %v18, 4294901760
  %v438 = vsub.f32 %v18, %v437
  %v439 = vand.u32 %v438, 4294901760
  %440 = vmatpush1.msra.mxu0 %v439
  %441 = vmatprep.subr.mxu0 0.0
  %v442 = vand.u32 %v19, 4294901760
  %v443 = vsub.f32 %v19, %v442
  %v444 = vand.u32 %v443, 4294901760
  %445 = vmatpush1.msra.mxu0 %v444
  %446 = vmatprep.subr.mxu0 0.0
  %v447 = vand.u32 %v20, 4294901760
  %v448 = vsub.f32 %v20, %v447
  %v449 = vand.u32 %v448, 4294901760
  %450 = vmatpush1.msra.mxu0 %v449
  %451 = vmatprep.subr.mxu0 0.0
  %v452 = vand.u32 %v21, 4294901760
  %v453 = vsub.f32 %v21, %v452
  %v454 = vand.u32 %v453, 4294901760
  %455 = vmatpush1.msra.mxu0 %v454
  %456 = vmatprep.subr.mxu0 0.0
  %v457 = vand.u32 %v22, 4294901760
  %v458 = vsub.f32 %v22, %v457
  %v459 = vand.u32 %v458, 4294901760
  %460 = vmatpush1.msra.mxu0 %v459
  %461 = vmatprep.subr.mxu0 0.0
  %v462 = vand.u32 %v23, 4294901760
  %v463 = vsub.f32 %v23, %v462
  %v464 = vand.u32 %v463, 4294901760
  %465 = vmatpush1.msra.mxu0 %v464
  %466 = vmatprep.subr.mxu0 0.0
  %v467 = vand.u32 %v38, 4294901760
  %v468 = vsub.f32 %v38, %v467
  %v469 = vand.u32 %v468, 4294901760
  %470 = vmatpush1.msra.mxu0 %v469
  %471 = vmatprep.subr.mxu0 0.0
  %472 = vmatpush1.msra.mxu0 0.0
  %473 = vmatprep.subr.mxu0 0.0
  %474 = vmatpush1.msra.mxu0 0.0
  %475 = vmatprep.subr.mxu0 0.0
  %476 = vmatpush1.msra.mxu0 0.0
  %477 = vmatprep.subr.mxu0 0.0
  %478 = vmatpush1.msra.mxu0 0.0
  %479 = vmatprep.subr.mxu0 0.0
  %480 = vmatpush1.msra.mxu0 0.0
  %481 = vmatprep.subr.mxu0 0.0
  %482 = vmatpush1.msra.mxu0 0.0
  %483 = vmatprep.subr.mxu0 0.0
  %484 = vmatpush1.msra.mxu0 0.0
  %485 = vmatprep.subr.mxu0 0.0
  %486 = vmatpush1.msra.mxu0 0.0
  %487 = vmatprep.subr.mxu0 0.0
  %488 = vmatpush1.msra.mxu0 0.0
  %489 = vmatprep.subr.mxu0 0.0
  %490 = vmatpush1.msra.mxu0 0.0
  %491 = vmatprep.subr.mxu0 0.0
  %492 = vmatpush1.msra.mxu0 0.0
  %493 = vmatprep.subr.mxu0 0.0
  %494 = vmatpush1.msra.mxu0 0.0
  %495 = vmatprep.subr.mxu0 0.0
  %496 = vmatpush1.msra.mxu0 0.0
  %497 = vmatprep.subr.mxu0 0.0
  %498 = vmatpush1.msra.mxu0 0.0
  %499 = vmatprep.subr.mxu0 0.0
  %500 = vmatpush1.msra.mxu0 0.0
  %501 = vmatprep.subr.mxu0 0.0
  %502 = vmatpush1.msra.mxu0 0.0
  %503 = vmatprep.subr.mxu0 0.0
  %504 = vmatpush1.msra.mxu0 0.0
  %505 = vmatprep.subr.mxu0 0.0
  %506 = vmatpush1.msra.mxu0 0.0
  %507 = vmatprep.subr.mxu0 0.0
  %508 = vmatpush1.msra.mxu0 0.0
  %509 = vmatprep.subr.mxu0 0.0
  %510 = vmatpush1.msra.mxu0 0.0
  %511 = vmatprep.subr.mxu0 0.0
  %512 = vmatpush1.msra.mxu0 0.0
  %513 = vmatprep.subr.mxu0 0.0
  %514 = vmatpush1.msra.mxu0 0.0
  %515 = vmatprep.mubr.f32.mxu0 0.0
  %v516 = vand.u32 %v34, 4294901760
  %517 = vmatmul.mubr.f32.gmra.mrb[0].mxu0 %v516
  %v518 = vpop.f32.mrb[0].mxu0
  %v519 = vadd.f32 %v418, %v518
  %v520 = vpop.f32.mrb[0].mxu0
  %521 = vdwg.mxu0
  %522 = vmatprep.subr.mxu0 0.0
  %v523 = vand.u32 %v15, 4294901760
  %524 = vmatpush1.msra.mxu0 %v523
  %525 = vmatprep.subr.mxu0 0.0
  %v526 = vand.u32 %v16, 4294901760
  %527 = vmatpush1.msra.mxu0 %v526
  %528 = vmatprep.subr.mxu0 0.0
  %v529 = vand.u32 %v17, 4294901760
  %530 = vmatpush1.msra.mxu0 %v529
  %531 = vmatprep.subr.mxu0 0.0
  %v532 = vand.u32 %v18, 4294901760
  %533 = vmatpush1.msra.mxu0 %v532
  %534 = vmatprep.subr.mxu0 0.0
  %v535 = vand.u32 %v19, 4294901760
  %536 = vmatpush1.msra.mxu0 %v535
  %537 = vmatprep.subr.mxu0 0.0
  %v538 = vand.u32 %v20, 4294901760
  %539 = vmatpush1.msra.mxu0 %v538
  %540 = vmatprep.subr.mxu0 0.0
  %v541 = vand.u32 %v21, 4294901760
  %542 = vmatpush1.msra.mxu0 %v541
  %543 = vmatprep.subr.mxu0 0.0
  %v544 = vand.u32 %v22, 4294901760
  %545 = vmatpush1.msra.mxu0 %v544
  %546 = vmatprep.subr.mxu0 0.0
  %v547 = vand.u32 %v23, 4294901760
  %548 = vmatpush1.msra.mxu0 %v547
  %549 = vmatprep.subr.mxu0 0.0
  %v550 = vand.u32 %v38, 4294901760
  %551 = vmatpush1.msra.mxu0 %v550
  %552 = vmatprep.subr.mxu0 0.0
  %553 = vmatpush1.msra.mxu0 0.0
  %554 = vmatprep.subr.mxu0 0.0
  %555 = vmatpush1.msra.mxu0 0.0
  %556 = vmatprep.subr.mxu0 0.0
  %557 = vmatpush1.msra.mxu0 0.0
  %558 = vmatprep.subr.mxu0 0.0
  %559 = vmatpush1.msra.mxu0 0.0
  %560 = vmatprep.subr.mxu0 0.0
  %561 = vmatpush1.msra.mxu0 0.0
  %562 = vmatprep.subr.mxu0 0.0
  %563 = vmatpush1.msra.mxu0 0.0
  %564 = vmatprep.subr.mxu0 0.0
  %565 = vmatpush1.msra.mxu0 0.0
  %566 = vmatprep.subr.mxu0 0.0
  %567 = vmatpush1.msra.mxu0 0.0
  %568 = vmatprep.subr.mxu0 0.0
  %569 = vmatpush1.msra.mxu0 0.0
  %570 = vmatprep.subr.mxu0 0.0
  %571 = vmatpush1.msra.mxu0 0.0
  %572 = vmatprep.subr.mxu0 0.0
  %573 = vmatpush1.msra.mxu0 0.0
  %574 = vmatprep.subr.mxu0 0.0
  %575 = vmatpush1.msra.mxu0 0.0
  %576 = vmatprep.subr.mxu0 0.0
  %577 = vmatpush1.msra.mxu0 0.0
  %578 = vmatprep.subr.mxu0 0.0
  %579 = vmatpush1.msra.mxu0 0.0
  %580 = vmatprep.subr.mxu0 0.0
  %581 = vmatpush1.msra.mxu0 0.0
  %582 = vmatprep.subr.mxu0 0.0
  %583 = vmatpush1.msra.mxu0 0.0
  %584 = vmatprep.subr.mxu0 0.0
  %585 = vmatpush1.msra.mxu0 0.0
  %586 = vmatprep.subr.mxu0 0.0
  %587 = vmatpush1.msra.mxu0 0.0
  %588 = vmatprep.subr.mxu0 0.0
  %589 = vmatpush1.msra.mxu0 0.0
  %590 = vmatprep.subr.mxu0 0.0
  %591 = vmatpush1.msra.mxu0 0.0
  %592 = vmatprep.subr.mxu0 0.0
  %593 = vmatpush1.msra.mxu0 0.0
  %594 = vmatprep.subr.mxu0 0.0
  %595 = vmatpush1.msra.mxu0 0.0
  %596 = vmatprep.mubr.f32.mxu0 0.0
  %v597 = vand.u32 %v34, 4294901760
  %598 = vmatmul.mubr.f32.gmra.mrb[0].mxu0 %v597
  %v599 = vpop.f32.mrb[0].mxu0
  %v600 = vadd.f32 %v519, %v599
  %v601 = vpop.f32.mrb[0].mxu0
  %602 = vdwg.mxu0
  %v603 = vmax.f32 %v600, 0.0
  %vm604 = vcmask 582656
  %605 = vst.msk [vmem:[%s3] sm:$0x3] %vm604, %v603
  // Predicated region
  $region14: #{model_forward.1} parent=0 // pred_check
    _
  $region15: #{model_forward.1} parent=0 // pred_check_branch
    %607 = sbr.rel (0) target = $region17
  $region16: #{model_forward.1} parent=0 // pred_region
    _
  $region17: #{model_forward.1} parent=0 // pred_fallthru
    _
  // Predicated region
  $region18: #{model_forward.1} parent=0 // pred_check
    _
  $region19: #{model_forward.1} parent=0 // pred_check_branch
    %609 = sbr.rel (0) target = $region21
  $region20: #{model_forward.1} parent=0 // pred_region
    _
  $region21: #{model_forward.1} parent=0 // pred_fallthru
    _

</llo_original>
